<compile_context>
chip_gen: v6e
topology: v6e:2x2x1
jax: 0.10.0
libtpu: 0.0.40
codegen_flags: <defaults>
</compile_context>

<pallas_src>
import jax
import jax.numpy as jnp
import numpy as np
from jax.experimental import pallas as pl
from jax.experimental.pallas import tpu as pltpu

HIDDEN = 768          # nn.Embedding(4, 768)
N_MODALITIES = 4
MAX_ROW_TILE = 512    # 512 * 768 * 4B = 1.5 MiB per f32 block


def _round_up(x, m):
    return ((x + m - 1) // m) * m


def embed_add_kernel(codes_ref, table_ref, q_ref, o_ref):
    """One grid step handles `row_tile` query rows.

    codes_ref : (T, 1) int32  -- modality code per row
    table_ref : (4, D) f32    -- full modality embedding table (VMEM-resident)
    q_ref     : (T, D) f32    -- precomputed query (text) embeddings
    o_ref     : (T, D) f32    -- modality_embed[code] + query
    """
    codes = codes_ref[...]                            # (T, 1) int32
    q = q_ref[...]                                    # (T, D) f32

    # Read the 4 table rows once, keep them at (1, D); the selects broadcast
    # lazily against the (T, 1) code mask.  Seeding with row 0 drops the zeros
    # init and one select — only 3 where's, all VPU work hidden under the HBM
    # read/write of q / o.
    rows = [table_ref[k, :][None, :] for k in range(N_MODALITIES)]  # 4 x (1, D)
    mod_feat = rows[0]
    for k in range(1, N_MODALITIES):
        mod_feat = jnp.where(codes == k, rows[k], mod_feat)
    # NOTE: codes outside [0, 3] fall through to row 0 here (the reference
    # nn.Embedding would be out-of-bounds); acceptable for valid inputs.

    o_ref[...] = q + mod_feat


def basebert_embed_forward(queries, modality_code, modality_table,
                           *, max_row_tile=MAX_ROW_TILE):
    """queries: [N, D] f32, modality_code: [N] int, modality_table: [4, D] f32."""
    N, D = queries.shape
    V = modality_table.shape[0]

    # Adaptive tile: big for large N (amortize per-step overhead), clamped for
    # small N so we never read/write hundreds of padded rows.  Keep the
    # sublane (8) alignment required by the (8, 128) tiling constraint.
    row_tile = min(max_row_tile, _round_up(N, 8))

    # Ragged N: pad up to a multiple of the row tile, slice the result back.
    grid = pl.cdiv(N, row_tile)
    n_pad = grid * row_tile
    if n_pad != N:
        queries = jnp.pad(queries, ((0, n_pad - N), (0, 0)))
        modality_code = jnp.pad(modality_code, (0, n_pad - N))

    codes2d = modality_code.reshape(n_pad, 1).astype(jnp.int32)

    out = pl.pallas_call(
        embed_add_kernel,
        out_shape=jax.ShapeDtypeStruct((n_pad, D), queries.dtype),
        grid=(grid,),
        in_specs=[
            pl.BlockSpec((row_tile, 1), lambda i: (i, 0)),   # modality codes
            pl.BlockSpec((V, D), lambda i: (0, 0)),          # full embed table
            pl.BlockSpec((row_tile, D), lambda i: (i, 0)),   # query embeddings
        ],
        out_specs=pl.BlockSpec((row_tile, D), lambda i: (i, 0)),
        compiler_params=pltpu.CompilerParams(
            dimension_semantics=("parallel",)),
    )(codes2d, modality_table, queries)

    return out[:N] if n_pad != N else out


if __name__ == "__main__":
    key = jax.random.PRNGKey(0)
    k_table, k_dict, k_code = jax.random.split(key, 3)

    # Deterministic stand-in for nn.Embedding(4, 768).weight
    modality_table = jax.random.normal(k_table, (N_MODALITIES, HIDDEN),
                                       dtype=jnp.float32) * 0.02

    # Deterministic stand-in for the precomputed text-embedding .npy dict.
    # TODO(synk): the real module loads per-text .npy files from disk; here we
    # synthesize equivalent [1, 768] embeddings in-script.
    text_names = ["photo", "video", "audio", "caption"]
    dict_embeds = jax.random.normal(k_dict, (len(text_names), 1, HIDDEN),
                                    dtype=jnp.float32)
    embeddings_dict = {name: dict_embeds[i] for i, name in enumerate(text_names)}

    # Simulated forward inputs: a batch of 10 text queries (NOT a multiple of
    # 8 — exercises the adaptive-tile + padding path) + modality codes.
    input_text = ["photo", "video", "audio", "caption", "photo",
                  "caption", "video", "audio", "photo", "video"]
    queries = jnp.concatenate([embeddings_dict[t.lower()] for t in input_text],
                              axis=0)                                  # [10, 768]
    modality_code = jax.random.randint(k_code, (len(input_text),), 0,
                                       N_MODALITIES, dtype=jnp.int32)  # [10]

    out = basebert_embed_forward(queries, modality_code, modality_table)
    out = jax.block_until_ready(out)

    # Reference (plain JAX) check of the exact forward semantics.
    ref = modality_table[modality_code] + queries
    np.testing.assert_allclose(np.asarray(out), np.asarray(ref),
                               rtol=1e-6, atol=1e-6)
    print("KERNEL_OK")
</pallas_src>

<mosaic_0001>
module attributes {stable_mosaic.version = 11 : i64} {
  func.func @embed_add_kernel(%arg0: i32, %arg1: memref<16x1xi32, #tpu.memory_space<vmem>>, %arg2: memref<4x768xf32, #tpu.memory_space<vmem>>, %arg3: memref<16x768xf32, #tpu.memory_space<vmem>>, %arg4: memref<16x768xf32, #tpu.memory_space<vmem>>) attributes {dimension_semantics = [#tpu.dimension_semantics<parallel>], iteration_bounds = array<i64: 1>, scalar_prefetch = 0 : i64, scratch_operands = 0 : i64, tpu.core_type = #tpu.core_type<tc>, window_params = [{transform_indices = @transform_0, window_bounds = array<i64: 16, 1>}, {pipeline_mode = #tpu.pipeline_mode<synchronous>, transform_indices = @transform_1, window_bounds = array<i64: 4, 768>}, {transform_indices = @transform_2, window_bounds = array<i64: 16, 768>}, {transform_indices = @transform_3, window_bounds = array<i64: 16, 768>}]} {
    %c0 = arith.constant 0 : index
    %c0_0 = arith.constant 0 : index
    %0 = vector.load %arg1[%c0, %c0_0] : memref<16x1xi32, #tpu.memory_space<vmem>>, vector<16x1xi32>
    %c0_1 = arith.constant 0 : index
    %c0_2 = arith.constant 0 : index
    %1 = vector.load %arg3[%c0_1, %c0_2] : memref<16x768xf32, #tpu.memory_space<vmem>>, vector<16x768xf32>
    %c0_3 = arith.constant 0 : index
    %c0_4 = arith.constant 0 : index
    %2 = vector.load %arg2[%c0_3, %c0_4] : memref<4x768xf32, #tpu.memory_space<vmem>>, vector<1x768xf32>
    %3 = vector.shape_cast %2 : vector<1x768xf32> to vector<768xf32>
    %4 = vector.shape_cast %3 : vector<768xf32> to vector<1x768xf32>
    %c1 = arith.constant 1 : index
    %c0_5 = arith.constant 0 : index
    %5 = vector.load %arg2[%c1, %c0_5] : memref<4x768xf32, #tpu.memory_space<vmem>>, vector<1x768xf32>
    %6 = vector.shape_cast %5 : vector<1x768xf32> to vector<768xf32>
    %7 = vector.shape_cast %6 : vector<768xf32> to vector<1x768xf32>
    %c2 = arith.constant 2 : index
    %c0_6 = arith.constant 0 : index
    %8 = vector.load %arg2[%c2, %c0_6] : memref<4x768xf32, #tpu.memory_space<vmem>>, vector<1x768xf32>
    %9 = vector.shape_cast %8 : vector<1x768xf32> to vector<768xf32>
    %10 = vector.shape_cast %9 : vector<768xf32> to vector<1x768xf32>
    %c3 = arith.constant 3 : index
    %c0_7 = arith.constant 0 : index
    %11 = vector.load %arg2[%c3, %c0_7] : memref<4x768xf32, #tpu.memory_space<vmem>>, vector<1x768xf32>
    %12 = vector.shape_cast %11 : vector<1x768xf32> to vector<768xf32>
    %13 = vector.shape_cast %12 : vector<768xf32> to vector<1x768xf32>
    %c1_i32 = arith.constant 1 : i32
    %14 = vector.broadcast %c1_i32 : i32 to vector<16x1xi32>
    %15 = arith.cmpi eq, %0, %14 : vector<16x1xi32>
    %16 = vector.shape_cast %15 : vector<16x1xi1> to vector<16x1xi1>
    %17 = vector.broadcast %16 : vector<16x1xi1> to vector<16x768xi1>
    %18 = vector.shape_cast %7 : vector<1x768xf32> to vector<1x768xf32>
    %19 = vector.broadcast %18 : vector<1x768xf32> to vector<16x768xf32>
    %20 = vector.shape_cast %4 : vector<1x768xf32> to vector<1x768xf32>
    %21 = vector.broadcast %20 : vector<1x768xf32> to vector<16x768xf32>
    %22 = arith.select %17, %19, %21 : vector<16x768xi1>, vector<16x768xf32>
    %c2_i32 = arith.constant 2 : i32
    %23 = vector.broadcast %c2_i32 : i32 to vector<16x1xi32>
    %24 = arith.cmpi eq, %0, %23 : vector<16x1xi32>
    %25 = vector.shape_cast %24 : vector<16x1xi1> to vector<16x1xi1>
    %26 = vector.broadcast %25 : vector<16x1xi1> to vector<16x768xi1>
    %27 = vector.shape_cast %10 : vector<1x768xf32> to vector<1x768xf32>
    %28 = vector.broadcast %27 : vector<1x768xf32> to vector<16x768xf32>
    %29 = arith.select %26, %28, %22 : vector<16x768xi1>, vector<16x768xf32>
    %c3_i32 = arith.constant 3 : i32
    %30 = vector.broadcast %c3_i32 : i32 to vector<16x1xi32>
    %31 = arith.cmpi eq, %0, %30 : vector<16x1xi32>
    %32 = vector.shape_cast %31 : vector<16x1xi1> to vector<16x1xi1>
    %33 = vector.broadcast %32 : vector<16x1xi1> to vector<16x768xi1>
    %34 = vector.shape_cast %13 : vector<1x768xf32> to vector<1x768xf32>
    %35 = vector.broadcast %34 : vector<1x768xf32> to vector<16x768xf32>
    %36 = arith.select %33, %35, %29 : vector<16x768xi1>, vector<16x768xf32>
    %37 = arith.addf %1, %36 : vector<16x768xf32>
    %c0_8 = arith.constant 0 : index
    %c0_9 = arith.constant 0 : index
    %38 = vector.load %arg4[%c0_8, %c0_9] : memref<16x768xf32, #tpu.memory_space<vmem>>, vector<16x768xf32>
    tpu.vector_store %arg4[%c0_8, %c0_9], %37 {strides = array<i32>} : memref<16x768xf32, #tpu.memory_space<vmem>>, vector<16x768xf32>,
    return
  }
  func.func @transform_0(%arg0: i32) -> (i32, i32) {
    %c0_i32 = arith.constant 0 : i32
    %c0_i32_0 = arith.constant 0 : i32
    return %arg0, %c0_i32 : i32, i32
  }
  func.func @transform_1(%arg0: i32) -> (i32, i32) {
    %c0_i32 = arith.constant 0 : i32
    %c0_i32_0 = arith.constant 0 : i32
    %c0_i32_1 = arith.constant 0 : i32
    return %c0_i32, %c0_i32_0 : i32, i32
  }
  func.func @transform_2(%arg0: i32) -> (i32, i32) {
    %c0_i32 = arith.constant 0 : i32
    %c0_i32_0 = arith.constant 0 : i32
    return %arg0, %c0_i32 : i32, i32
  }
  func.func @transform_3(%arg0: i32) -> (i32, i32) {
    %c0_i32 = arith.constant 0 : i32
    %c0_i32_0 = arith.constant 0 : i32
    return %arg0, %c0_i32 : i32, i32
  }
}

</mosaic_0001>

<llo_original>
// kernel: tpu_custom_call.1
$region0: #{tpu_custom_call.1}
  #allocation0 [shape = 'u32[]', space=smem, size = 0x4, offset = 0x4, fixed_abs, tag = 'smem constant byte address 0x4 - core index']
  #allocation1 [shape = 'u32[144,128]{1,0:T(1,128)}', space=vmem, size = 0x12000, scoped, tag = 'internal scratch']
  %s0 = inlined_call_operand.vmem [shape: s32[16,1], index: 0, kind: input, shape index: {}]
  %s1 = inlined_call_operand.hbm [shape: f32[4,768], index: 1, kind: input, shape index: {}]
  %s2 = inlined_call_operand.hbm [shape: f32[16,768], index: 2, kind: input, shape index: {}]
  %s3 = inlined_call_operand.hbm [shape: f32[16,768], index: 3, kind: output, shape index: {}]
  %s4 = sld [smem:[#allocation0]]
  $region30: #{tpu_custom_call.1} parent=0
    _
  %s6 = ssub.s32 1, %s4
  %s7 = scalar_select 0, %s6, %s4
  $region1: #{tpu_custom_call.1} parent=0
    #allocation2 [shape = 'u8[12288]{0}', space=vmem, size = 0x3000, scoped, tag = 'input window, operand 1, single buffered']
    #allocation3 [shape = 's32[1]{0}', space=sflag, size = 0x4, scoped, tag = 'scoped memory for tpu_custom_call.1']
    #allocation4 [shape = 's32[1]{0}', space=sflag, size = 0x4, scoped, tag = 'scoped memory for tpu_custom_call.1']
    #allocation5 [shape = 'u8[49152]{0}', space=vmem, size = 0xc000, scoped, tag = 'input window, operand 2, single buffered']
    #allocation6 [shape = 's32[1]{0}', space=sflag, size = 0x4, scoped, tag = 'scoped memory for tpu_custom_call.1']
    #allocation7 [shape = 'u8[49152]{0}', space=vmem, size = 0xc000, scoped, tag = 'output window, operand 0, single buffered']
    %8 = vsyncpa [#allocation3], 0
    %9 = vsyncpa [#allocation6], 0
    %10 = vsyncpa [#allocation4], 0
    // Predicated region
    $region2: #{tpu_custom_call.1} parent=1 // pred_check
      _
    $region3: #{tpu_custom_call.1} parent=1 // pred_check_branch
      %12 = sbr.rel (0) target = $region5
    $region4: #{tpu_custom_call.1} parent=1 // pred_region
      _
    $region5: #{tpu_custom_call.1} parent=1 // pred_fallthru
      _
    // Predicated region
    $region6: #{tpu_custom_call.1} parent=1 // pred_check
      _
    $region7: #{tpu_custom_call.1} parent=1 // pred_check_branch
      %14 = sbr.rel (0) target = $region9
    $region8: #{tpu_custom_call.1} parent=1 // pred_region
      %s16 = ssub.s32 384, 384
      %17 = vsyncadd [#allocation3], %s16
      %s19 = sshll.u32 [#allocation2], 4
      %s20 = int_to_ptr.vmem [resolvable:$true] %s19
      %22 = dma.hbm_to_vmem [thread:$0]  %s1, 384, %s20, [#allocation3]
    $region9: #{tpu_custom_call.1} parent=1 // pred_fallthru
      _
    // Predicated region
    $region10: #{tpu_custom_call.1} parent=1 // pred_check
      _
    $region11: #{tpu_custom_call.1} parent=1 // pred_check_branch
      %24 = sbr.rel (0) target = $region13
    $region12: #{tpu_custom_call.1} parent=1 // pred_region
      %s26 = ssub.s32 1536, 1536
      %27 = vsyncadd [#allocation6], %s26
      %s28 = sshll.u32 [#allocation5], 4
      %s29 = int_to_ptr.vmem [resolvable:$true] %s28
      %34 = dma.hbm_to_vmem [thread:$0]  %s2, 1536, %s29, [#allocation6], 768, 768, 48
    $region13: #{tpu_custom_call.1} parent=1 // pred_fallthru
      _
    // Predicated region
    $region14: #{tpu_custom_call.1} parent=1 // pred_check
      _
    $region15: #{tpu_custom_call.1} parent=1 // pred_check_branch
      %36 = sbr.rel (0) target = $region17
    $region16: #{tpu_custom_call.1} parent=1 // pred_region
      %37 = dma.done [#allocation3], 384
    $region17: #{tpu_custom_call.1} parent=1 // pred_fallthru
      _
    // Predicated region
    $region18: #{tpu_custom_call.1} parent=1 // pred_check
      _
    $region19: #{tpu_custom_call.1} parent=1 // pred_check_branch
      %39 = sbr.rel (0) target = $region21
    $region20: #{tpu_custom_call.1} parent=1 // pred_region
      %40 = dma.done [#allocation6], 1536
    $region21: #{tpu_custom_call.1} parent=1 // pred_fallthru
      _
    %v41 = vld [vmem:[%s0] sm:$0xff]
    %v42 = vld [vmem:[%s0 + $0x8] sm:$0xff]
    %v43 = vld [vmem:[#allocation5] sm:$0xff]
    %v44 = vld [vmem:[#allocation5 + $0x8] sm:$0xff]
    %v45 = vld [vmem:[#allocation5 + $0x10] sm:$0xff]
    %v46 = vld [vmem:[#allocation5 + $0x18] sm:$0xff]
    %v47 = vld [vmem:[#allocation5 + $0x20] sm:$0xff]
    %v48 = vld [vmem:[#allocation5 + $0x28] sm:$0xff]
    %v49 = vld [vmem:[#allocation5 + $0x30] sm:$0xff]
    %v50 = vld [vmem:[#allocation5 + $0x38] sm:$0xff]
    %v51 = vld [vmem:[#allocation5 + $0x40] sm:$0xff]
    %v52 = vld [vmem:[#allocation5 + $0x48] sm:$0xff]
    %v53 = vld [vmem:[#allocation5 + $0x50] sm:$0xff]
    %v54 = vld [vmem:[#allocation5 + $0x58] sm:$0xff]
    %v55 = vld [vmem:[#allocation2] ss:$4 sm:$0x3f]
    %s56 = scalar_lea.vmem [#allocation2], 1
    %v57 = vld [vmem:[%s56] ss:$4 sm:$0x3f]
    %s58 = scalar_lea.vmem [#allocation2], 2
    %v59 = vld [vmem:[%s58] ss:$4 sm:$0x3f]
    %s60 = scalar_lea.vmem [#allocation2], 3
    %v61 = vld [vmem:[%s60] ss:$4 sm:$0x3f]
    %vm62 = vcmp.eq.s32.totalorder %v41, 1
    %vm63 = vcmp.eq.s32.totalorder %v42, 1
    %v64 = vsel %vm62, 1, 0
    %v65 = vsel %vm63, 1, 0
    %66 = vset.pattern.permute.xlu0 0
    %67 = vperm.xlu0 %66, %v64
    %v68 = vpop.permute.xlu0 %67
    %69 = vset.pattern.permute.xlu0 0
    %70 = vperm.xlu0 %69, %v65
    %v71 = vpop.permute.xlu0 %70
    %vm72 = vcmp.eq.s32.totalorder %v68, 1
    %vm73 = vcmp.eq.s32.totalorder %v71, 1
    %v75 = vlaneseq
    %v76 = vshrl.u32 %v75, 7
    %v77 = vsub.s32 0, %v76
    %v78 = vrot.slane %v57, %v77
    %v79 = vlaneseq
    %v80 = vshrl.u32 %v79, 7
    %v81 = vsub.s32 1, %v80
    %v82 = vrot.slane %v57, %v81
    %v83 = vlaneseq
    %v84 = vshrl.u32 %v83, 7
    %v85 = vsub.s32 2, %v84
    %v86 = vrot.slane %v57, %v85
    %v87 = vlaneseq
    %v88 = vshrl.u32 %v87, 7
    %v89 = vsub.s32 3, %v88
    %v90 = vrot.slane %v57, %v89
    %v91 = vlaneseq
    %v92 = vshrl.u32 %v91, 7
    %v93 = vsub.s32 4, %v92
    %v94 = vrot.slane %v57, %v93
    %v95 = vlaneseq
    %v96 = vshrl.u32 %v95, 7
    %v97 = vsub.s32 5, %v96
    %v98 = vrot.slane %v57, %v97
    %v106 = vlaneseq
    %v107 = vshrl.u32 %v106, 7
    %v108 = vsub.s32 0, %v107
    %v109 = vrot.slane %v55, %v108
    %v110 = vlaneseq
    %v111 = vshrl.u32 %v110, 7
    %v112 = vsub.s32 1, %v111
    %v113 = vrot.slane %v55, %v112
    %v114 = vlaneseq
    %v115 = vshrl.u32 %v114, 7
    %v116 = vsub.s32 2, %v115
    %v117 = vrot.slane %v55, %v116
    %v118 = vlaneseq
    %v119 = vshrl.u32 %v118, 7
    %v120 = vsub.s32 3, %v119
    %v121 = vrot.slane %v55, %v120
    %v122 = vlaneseq
    %v123 = vshrl.u32 %v122, 7
    %v124 = vsub.s32 4, %v123
    %v125 = vrot.slane %v55, %v124
    %v126 = vlaneseq
    %v127 = vshrl.u32 %v126, 7
    %v128 = vsub.s32 5, %v127
    %v129 = vrot.slane %v55, %v128
    %v136 = vsel %vm72, %v78, %v109
    %v137 = vsel %vm72, %v82, %v113
    %v138 = vsel %vm72, %v86, %v117
    %v139 = vsel %vm72, %v90, %v121
    %v140 = vsel %vm72, %v94, %v125
    %v141 = vsel %vm72, %v98, %v129
    %v142 = vsel %vm73, %v78, %v109
    %v143 = vsel %vm73, %v82, %v113
    %v144 = vsel %vm73, %v86, %v117
    %v145 = vsel %vm73, %v90, %v121
    %v146 = vsel %vm73, %v94, %v125
    %v147 = vsel %vm73, %v98, %v129
    %vm148 = vcmp.eq.s32.totalorder %v41, 2
    %vm149 = vcmp.eq.s32.totalorder %v42, 2
    %v150 = vsel %vm148, 1, 0
    %v151 = vsel %vm149, 1, 0
    %152 = vset.pattern.permute.xlu0 0
    %153 = vperm.xlu0 %152, %v150
    %v154 = vpop.permute.xlu0 %153
    %155 = vset.pattern.permute.xlu0 0
    %156 = vperm.xlu0 %155, %v151
    %v157 = vpop.permute.xlu0 %156
    %vm158 = vcmp.eq.s32.totalorder %v154, 1
    %vm159 = vcmp.eq.s32.totalorder %v157, 1
    %v161 = vlaneseq
    %v162 = vshrl.u32 %v161, 7
    %v163 = vsub.s32 0, %v162
    %v164 = vrot.slane %v59, %v163
    %v165 = vlaneseq
    %v166 = vshrl.u32 %v165, 7
    %v167 = vsub.s32 1, %v166
    %v168 = vrot.slane %v59, %v167
    %v169 = vlaneseq
    %v170 = vshrl.u32 %v169, 7
    %v171 = vsub.s32 2, %v170
    %v172 = vrot.slane %v59, %v171
    %v173 = vlaneseq
    %v174 = vshrl.u32 %v173, 7
    %v175 = vsub.s32 3, %v174
    %v176 = vrot.slane %v59, %v175
    %v177 = vlaneseq
    %v178 = vshrl.u32 %v177, 7
    %v179 = vsub.s32 4, %v178
    %v180 = vrot.slane %v59, %v179
    %v181 = vlaneseq
    %v182 = vshrl.u32 %v181, 7
    %v183 = vsub.s32 5, %v182
    %v184 = vrot.slane %v59, %v183
    %v191 = vsel %vm158, %v164, %v136
    %v192 = vsel %vm158, %v168, %v137
    %v193 = vsel %vm158, %v172, %v138
    %v194 = vsel %vm158, %v176, %v139
    %v195 = vsel %vm158, %v180, %v140
    %v196 = vsel %vm158, %v184, %v141
    %v197 = vsel %vm159, %v164, %v142
    %v198 = vsel %vm159, %v168, %v143
    %v199 = vsel %vm159, %v172, %v144
    %v200 = vsel %vm159, %v176, %v145
    %v201 = vsel %vm159, %v180, %v146
    %v202 = vsel %vm159, %v184, %v147
    %vm203 = vcmp.eq.s32.totalorder %v41, 3
    %vm204 = vcmp.eq.s32.totalorder %v42, 3
    %v205 = vsel %vm203, 1, 0
    %v206 = vsel %vm204, 1, 0
    %207 = vset.pattern.permute.xlu0 0
    %208 = vperm.xlu0 %207, %v205
    %v209 = vpop.permute.xlu0 %208
    %210 = vset.pattern.permute.xlu0 0
    %211 = vperm.xlu0 %210, %v206
    %v212 = vpop.permute.xlu0 %211
    %vm213 = vcmp.eq.s32.totalorder %v209, 1
    %vm214 = vcmp.eq.s32.totalorder %v212, 1
    %v216 = vlaneseq
    %v217 = vshrl.u32 %v216, 7
    %v218 = vsub.s32 0, %v217
    %v219 = vrot.slane %v61, %v218
    %v220 = vlaneseq
    %v221 = vshrl.u32 %v220, 7
    %v222 = vsub.s32 1, %v221
    %v223 = vrot.slane %v61, %v222
    %v224 = vlaneseq
    %v225 = vshrl.u32 %v224, 7
    %v226 = vsub.s32 2, %v225
    %v227 = vrot.slane %v61, %v226
    %v228 = vlaneseq
    %v229 = vshrl.u32 %v228, 7
    %v230 = vsub.s32 3, %v229
    %v231 = vrot.slane %v61, %v230
    %v232 = vlaneseq
    %v233 = vshrl.u32 %v232, 7
    %v234 = vsub.s32 4, %v233
    %v235 = vrot.slane %v61, %v234
    %v236 = vlaneseq
    %v237 = vshrl.u32 %v236, 7
    %v238 = vsub.s32 5, %v237
    %v239 = vrot.slane %v61, %v238
    %v246 = vsel %vm213, %v219, %v191
    %v247 = vsel %vm213, %v223, %v192
    %v248 = vsel %vm213, %v227, %v193
    %v249 = vsel %vm213, %v231, %v194
    %v250 = vsel %vm213, %v235, %v195
    %v251 = vsel %vm213, %v239, %v196
    %v252 = vsel %vm214, %v219, %v197
    %v253 = vsel %vm214, %v223, %v198
    %v254 = vsel %vm214, %v227, %v199
    %v255 = vsel %vm214, %v231, %v200
    %v256 = vsel %vm214, %v235, %v201
    %v257 = vsel %vm214, %v239, %v202
    %v258 = vadd.f32 %v43, %v246
    %v259 = vadd.f32 %v44, %v247
    %v260 = vadd.f32 %v45, %v248
    %v261 = vadd.f32 %v46, %v249
    %v262 = vadd.f32 %v47, %v250
    %v263 = vadd.f32 %v48, %v251
    %v264 = vadd.f32 %v49, %v252
    %v265 = vadd.f32 %v50, %v253
    %v266 = vadd.f32 %v51, %v254
    %v267 = vadd.f32 %v52, %v255
    %v268 = vadd.f32 %v53, %v256
    %v269 = vadd.f32 %v54, %v257
    %270 = vst [vmem:[#allocation7] sm:$0xff] %v258
    %271 = vst [vmem:[#allocation7 + $0x8] sm:$0xff] %v259
    %272 = vst [vmem:[#allocation7 + $0x10] sm:$0xff] %v260
    %273 = vst [vmem:[#allocation7 + $0x18] sm:$0xff] %v261
    %274 = vst [vmem:[#allocation7 + $0x20] sm:$0xff] %v262
    %275 = vst [vmem:[#allocation7 + $0x28] sm:$0xff] %v263
    %276 = vst [vmem:[#allocation7 + $0x30] sm:$0xff] %v264
    %277 = vst [vmem:[#allocation7 + $0x38] sm:$0xff] %v265
    %278 = vst [vmem:[#allocation7 + $0x40] sm:$0xff] %v266
    %279 = vst [vmem:[#allocation7 + $0x48] sm:$0xff] %v267
    %280 = vst [vmem:[#allocation7 + $0x50] sm:$0xff] %v268
    %281 = vst [vmem:[#allocation7 + $0x58] sm:$0xff] %v269
    // Predicated region
    $region22: #{tpu_custom_call.1} parent=1 // pred_check
      _
    $region23: #{tpu_custom_call.1} parent=1 // pred_check_branch
      %283 = sbr.rel (0) target = $region25
    $region24: #{tpu_custom_call.1} parent=1 // pred_region
      %s285 = ssub.s32 1536, 1536
      %286 = vsyncadd [#allocation4], %s285
      %s287 = sshll.u32 [#allocation7], 4
      %s288 = int_to_ptr.vmem [resolvable:$true] %s287
      %293 = dma.vmem_to_hbm [thread:$0]  %s288, 1536, %s3, [#allocation4], 768, 768, 48
    $region25: #{tpu_custom_call.1} parent=1 // pred_fallthru
      _
    // Predicated region
    $region26: #{tpu_custom_call.1} parent=1 // pred_check
      _
    $region27: #{tpu_custom_call.1} parent=1 // pred_check_branch
      %295 = sbr.rel (0) target = $region29
    $region28: #{tpu_custom_call.1} parent=1 // pred_region
      %296 = dma.done [#allocation4], 1536
    $region29: #{tpu_custom_call.1} parent=1 // pred_fallthru
      _
    %297 = vsyncpa [#allocation3], 1
    %298 = vsyncpa [#allocation6], 1
    %299 = vsyncpa [#allocation4], 1

</llo_original>
